<compile_context>
chip_gen: v5e
topology: v5e:2x2
jax: 0.10.0
libtpu: 0.0.40
codegen_flags: <defaults>
</compile_context>

<pallas_src>
import jax
import jax.numpy as jnp
from jax import lax
from jax.experimental import pallas as pl
from jax.experimental.pallas import tpu as pltpu

THRES = 0.3        # conceptshap threshold
EPS_NORM = 1e-12   # matches F.normalize eps


def _concept_kernel(f_ref, tvn_ref, r1_ref, r2_ref, wf_ref, bc_ref,
                    pred_ref, tpn_ref, tpnn_ref, ae_ref):
    """One batch tile of the conceptSHAP forward hot path.

    f_ref   : (tb, D)  input features (zero-padded rows possible)
    tvn_ref : (D, C)   column-normalized topic_vector (precomputed)
    r1_ref  : (C, H)   rec_vector_1
    r2_ref  : (H, D)   rec_vector_2
    wf_ref  : (H, K)   fused frozen classifier weight (= rec_vector_2 @ W_clf)
    bc_ref  : (1, K)   frozen classifier bias
    outputs : pred (tb,K), topic_prob_n (tb,C), topic_prob_nn (tb,C),
              ae partial sum broadcast into an (8,128) slab.
    """
    f = f_ref[...]                                             # (tb, D)

    # 1 / ||f||  (== F.normalize denominator since ||f|| >> eps for real rows;
    # padded zero rows stay exactly zero after scaling).
    sumsq = jnp.sum(f * f, axis=-1, keepdims=True)             # (tb, 1)
    inv_norm = lax.rsqrt(jnp.maximum(sumsq, EPS_NORM * EPS_NORM))

    # Single concept matmul; normalized scores via row scaling:
    #   (f/||f||) @ tvn == (f @ tvn) / ||f||
    topic_prob = jnp.dot(f, tvn_ref[...], preferred_element_type=jnp.float32)  # (tb, C)
    topic_prob_n = topic_prob * inv_norm

    # threshold mask + renormalize (+0.001 as in the module)
    mask = (topic_prob_n > THRES).astype(topic_prob.dtype)
    topic_prob_am = topic_prob * mask
    topic_prob_sum = jnp.sum(topic_prob_am, axis=-1, keepdims=True) + 0.001
    topic_prob_nn = topic_prob_am * pl.reciprocal(topic_prob_sum, approx=True)

    # 2-layer reconstruction
    rec1 = jnp.maximum(
        jnp.dot(topic_prob_nn, r1_ref[...], preferred_element_type=jnp.float32), 0.0)
    rec2 = jnp.dot(rec1, r2_ref[...], preferred_element_type=jnp.float32)

    # frozen classifier, pre-fused with rec_vector_2
    pred = jnp.dot(rec1, wf_ref[...], preferred_element_type=jnp.float32) + bc_ref[...]

    # per-tile partial sum of the autoencoder loss (padded rows contribute 0)
    fn = f * inv_norm
    diff = fn - rec2
    tile_ae = jnp.sum(diff * diff)

    pred_ref[...] = pred
    tpn_ref[...] = topic_prob_n
    tpnn_ref[...] = topic_prob_nn
    ae_ref[...] = jnp.full(ae_ref.shape, tile_ae, dtype=ae_ref.dtype)


def topic_model_forward(f_input, topic_vector, rec_vector_1, rec_vector_2,
                        clf_w, clf_b, *, tile_b=128):
    B, D = f_input.shape
    C = topic_vector.shape[1]
    H = rec_vector_1.shape[1]
    K = clf_w.shape[1]
    assert tile_b % 8 == 0 and tile_b > 0

    f_input = f_input.astype(jnp.float32)

    # ---- parameter-only precompute (hoisted out of the kernel) ----
    tvn = topic_vector / jnp.maximum(
        jnp.sqrt(jnp.sum(topic_vector * topic_vector, axis=0, keepdims=True)), EPS_NORM)
    tvn = tvn.astype(jnp.float32)
    w_fused = (rec_vector_2 @ clf_w).astype(jnp.float32)          # (H, K) frozen
    bc2 = clf_b.reshape(1, K).astype(jnp.float32)

    # ---- pad batch so any tile_b can be used (ragged batches OK) ----
    num_tiles = pl.cdiv(B, tile_b)
    b_pad = num_tiles * tile_b
    f_in = f_input if b_pad == B else jnp.pad(f_input, ((0, b_pad - B), (0, 0)))

    batch_spec = lambda last: pl.BlockSpec((tile_b, last), lambda i: (i, 0))
    full_spec = lambda shape: pl.BlockSpec(shape, lambda i: (0, 0))

    out_shapes = (
        jax.ShapeDtypeStruct((b_pad, K), jnp.float32),            # pred
        jax.ShapeDtypeStruct((b_pad, C), jnp.float32),            # topic_prob_n
        jax.ShapeDtypeStruct((b_pad, C), jnp.float32),            # topic_prob_nn
        jax.ShapeDtypeStruct((num_tiles * 8, 128), jnp.float32),  # per-tile ae partials
    )
    out_specs = [
        batch_spec(K),
        batch_spec(C),
        batch_spec(C),
        pl.BlockSpec((8, 128), lambda i: (i, 0)),
    ]

    pred, tpn, tpnn, ae_part = pl.pallas_call(
        _concept_kernel,
        out_shape=out_shapes,
        grid_spec=pltpu.PrefetchScalarGridSpec(
            num_scalar_prefetch=0,
            grid=(num_tiles,),
            in_specs=[batch_spec(D),           # f_input (tiled over batch)
                      full_spec((D, C)),       # normalized topic_vector (resident)
                      full_spec((C, H)),       # rec_vector_1
                      full_spec((H, D)),       # rec_vector_2
                      full_spec((H, K)),       # fused classifier weight
                      full_spec((1, K))],      # classifier bias
            out_specs=out_specs,
        ),
        compiler_params=pltpu.CompilerParams(
            dimension_semantics=("parallel",),
            vmem_limit_bytes=48 * 1024 * 1024),
    )(f_in, tvn, rec_vector_1.astype(jnp.float32), rec_vector_2.astype(jnp.float32),
      w_fused, bc2)

    # strip batch padding
    pred = pred[:B]
    tpn = tpn[:B]
    tpnn = tpnn[:B]

    # ae_loss = mean over (B, D) of (f_input_n - rec_layer_2)^2; partial sums were
    # broadcast into (8,128) slabs, one per tile -> take one element per tile.
    ae_loss = jnp.sum(ae_part.reshape(num_tiles, 8, 128)[:, 0, 0]) / (B * D)

    # concept_sim: -mean(topk over batch per concept, k = B // 4)
    res = tpn.reshape(-1, C).T                                    # (C, B)
    k = max(B // 4, 1)
    concept_sim = -jnp.mean(lax.top_k(res, k)[0])

    # concept_far: mean(tvn^T @ tvn - I)  (reuses the hoisted tvn)
    concept_far = jnp.mean(tvn.T @ tvn - jnp.eye(C, dtype=tvn.dtype))

    # non-causal branch of the module: (pred, 0, concept_sim, concept_far, tpnn, ae_loss)
    # TODO(synk): causal flip-loss branch requires running an arbitrary external
    # classifier per perturbation; not translatable as a single static kernel.
    return pred, jnp.float32(0.0), concept_sim, concept_far, tpnn, ae_loss


def _reference_forward(f_input, topic_vector, rec_vector_1, rec_vector_2, clf_w, clf_b):
    """Pure-JAX reference mirroring the PyTorch forward (non-causal path)."""
    C = topic_vector.shape[1]
    fn = f_input / jnp.maximum(
        jnp.sqrt(jnp.sum(f_input ** 2, axis=-1, keepdims=True)), EPS_NORM)
    tvn = topic_vector / jnp.maximum(
        jnp.sqrt(jnp.sum(topic_vector ** 2, axis=0, keepdims=True)), EPS_NORM)
    tp = f_input @ tvn
    tpn = fn @ tvn
    mask = (tpn > THRES).astype(tp.dtype)
    am = tp * mask
    s = jnp.sum(am, axis=-1, keepdims=True) + 0.001
    tpnn = am / s
    r1 = jax.nn.relu(tpnn @ rec_vector_1)
    r2 = r1 @ rec_vector_2
    pred = r2 @ clf_w + clf_b
    ae_loss = jnp.mean((fn - r2) ** 2)
    res = tpn.reshape(-1, C).T
    concept_sim = -jnp.mean(lax.top_k(res, f_input.shape[0] // 4)[0])
    concept_far = jnp.mean(tvn.T @ tvn - jnp.eye(C, dtype=tvn.dtype))
    return pred, concept_sim, concept_far, tpnn, ae_loss


if __name__ == "__main__":
    # small shapes consistent with the module's forward
    B, D, C, H, K = 16, 32, 8, 16, 4   # batch, embed_dim, n_concept, hidden_dim, n_classes

    key = jax.random.PRNGKey(0)
    k_f, k_tv, k_r1, k_r2, k_w = jax.random.split(key, 5)

    f_input = jax.random.normal(k_f, (B, D), dtype=jnp.float32)
    # init_concept: uniform in [-0.5, 0.5]
    topic_vector = jax.random.uniform(k_tv, (D, C), minval=-0.5, maxval=0.5,
                                      dtype=jnp.float32)
    rec_vector_1 = jax.random.uniform(k_r1, (C, H), minval=-0.5, maxval=0.5,
                                      dtype=jnp.float32)
    rec_vector_2 = jax.random.uniform(k_r2, (H, D), minval=-0.5, maxval=0.5,
                                      dtype=jnp.float32)
    # frozen linear classifier (deterministic synthetic weights)
    clf_w = 0.1 * jax.random.normal(k_w, (D, K), dtype=jnp.float32)
    clf_b = jnp.zeros((K,), dtype=jnp.float32)

    out = topic_model_forward(f_input, topic_vector, rec_vector_1, rec_vector_2,
                              clf_w, clf_b, tile_b=128)
    out = jax.block_until_ready(out)
    pred, flip_loss, concept_sim, concept_far, tpnn, ae_loss = out

    # correctness check vs pure-JAX reference (tolerances allow for the fused
    # classifier reassociation and the EUP approx reciprocal)
    ref = _reference_forward(f_input, topic_vector, rec_vector_1, rec_vector_2,
                             clf_w, clf_b)
    r_pred, r_sim, r_far, r_tpnn, r_ae = jax.block_until_ready(ref)

    import numpy as np
    np.testing.assert_allclose(np.asarray(pred), np.asarray(r_pred), rtol=5e-3, atol=5e-4)
    np.testing.assert_allclose(np.asarray(tpnn), np.asarray(r_tpnn), rtol=5e-3, atol=5e-4)
    np.testing.assert_allclose(float(ae_loss), float(r_ae), rtol=5e-3, atol=1e-5)
    np.testing.assert_allclose(float(concept_sim), float(r_sim), rtol=1e-3, atol=1e-5)
    np.testing.assert_allclose(float(concept_far), float(r_far), rtol=1e-4, atol=1e-6)

    print("KERNEL_OK")
</pallas_src>

<mosaic_0001>
module attributes {stable_mosaic.version = 11 : i64} {
  func.func @_concept_kernel(%arg0: i32, %arg1: memref<128x32xf32, #tpu.memory_space<vmem>>, %arg2: memref<32x8xf32, #tpu.memory_space<vmem>>, %arg3: memref<8x16xf32, #tpu.memory_space<vmem>>, %arg4: memref<16x32xf32, #tpu.memory_space<vmem>>, %arg5: memref<16x4xf32, #tpu.memory_space<vmem>>, %arg6: memref<1x4xf32, #tpu.memory_space<vmem>>, %arg7: memref<128x4xf32, #tpu.memory_space<vmem>>, %arg8: memref<128x8xf32, #tpu.memory_space<vmem>>, %arg9: memref<128x8xf32, #tpu.memory_space<vmem>>, %arg10: memref<8x128xf32, #tpu.memory_space<vmem>>) attributes {dimension_semantics = [#tpu.dimension_semantics<parallel>], iteration_bounds = array<i64: 1>, scalar_prefetch = 0 : i64, scratch_operands = 0 : i64, tpu.core_type = #tpu.core_type<tc>, window_params = [{transform_indices = @transform_0, window_bounds = array<i64: 128, 32>}, {pipeline_mode = #tpu.pipeline_mode<synchronous>, transform_indices = @transform_1, window_bounds = array<i64: 32, 8>}, {pipeline_mode = #tpu.pipeline_mode<synchronous>, transform_indices = @transform_2, window_bounds = array<i64: 8, 16>}, {pipeline_mode = #tpu.pipeline_mode<synchronous>, transform_indices = @transform_3, window_bounds = array<i64: 16, 32>}, {pipeline_mode = #tpu.pipeline_mode<synchronous>, transform_indices = @transform_4, window_bounds = array<i64: 16, 4>}, {pipeline_mode = #tpu.pipeline_mode<synchronous>, transform_indices = @transform_5, window_bounds = array<i64: 1, 4>}, {transform_indices = @transform_6, window_bounds = array<i64: 128, 4>}, {transform_indices = @transform_7, window_bounds = array<i64: 128, 8>}, {transform_indices = @transform_8, window_bounds = array<i64: 128, 8>}, {transform_indices = @transform_9, window_bounds = array<i64: 8, 128>}]} {
    %c0 = arith.constant 0 : index
    %c0_0 = arith.constant 0 : index
    %0 = vector.load %arg1[%c0, %c0_0] : memref<128x32xf32, #tpu.memory_space<vmem>>, vector<128x32xf32>
    %1 = arith.mulf %0, %0 : vector<128x32xf32>
    %cst = arith.constant dense<0.000000e+00> : vector<128xf32>
    %2 = vector.multi_reduction <add>, %1, %cst [1] : vector<128x32xf32> to vector<128xf32>
    %3 = vector.shape_cast %2 : vector<128xf32> to vector<128x1xf32>
    %cst_1 = arith.constant 1.000000e-24 : f32
    %4 = vector.broadcast %cst_1 : f32 to vector<128x1xf32>
    %5 = arith.maximumf %3, %4 : vector<128x1xf32>
    %6 = math.rsqrt %5 : vector<128x1xf32>
    %c0_2 = arith.constant 0 : index
    %c0_3 = arith.constant 0 : index
    %7 = vector.load %arg2[%c0_2, %c0_3] : memref<32x8xf32, #tpu.memory_space<vmem>>, vector<32x8xf32>
    %cst_4 = arith.constant dense<0.000000e+00> : vector<128x8xf32>
    %8 = tpu.matmul %0, %7, %cst_4 {dimension_numbers = #tpu.dot_dimension_numbers<[1], [0], [0], [1], [0, 0, 1, 1], [], []>} : vector<128x32xf32>, vector<32x8xf32>, vector<128x8xf32> -> vector<128x8xf32>
    %9 = vector.broadcast %6 : vector<128x1xf32> to vector<128x8xf32>
    %10 = arith.mulf %8, %9 : vector<128x8xf32>
    %cst_5 = arith.constant 3.000000e-01 : f32
    %11 = vector.broadcast %cst_5 : f32 to vector<128x8xf32>
    %12 = arith.cmpf ogt, %10, %11 : vector<128x8xf32>
    %13 = arith.extui %12 : vector<128x8xi1> to vector<128x8xi32>
    %14 = arith.sitofp %13 : vector<128x8xi32> to vector<128x8xf32>
    %15 = arith.mulf %8, %14 : vector<128x8xf32>
    %cst_6 = arith.constant dense<0.000000e+00> : vector<128xf32>
    %16 = vector.multi_reduction <add>, %15, %cst_6 [1] : vector<128x8xf32> to vector<128xf32>
    %17 = vector.shape_cast %16 : vector<128xf32> to vector<128x1xf32>
    %cst_7 = arith.constant 1.000000e-03 : f32
    %18 = vector.broadcast %cst_7 : f32 to vector<128x1xf32>
    %19 = arith.addf %17, %18 : vector<128x1xf32>
    %20 = tpu.reciprocal %19 {approx = true} : vector<128x1xf32> -> vector<128x1xf32>
    %21 = vector.broadcast %20 : vector<128x1xf32> to vector<128x8xf32>
    %22 = arith.mulf %15, %21 : vector<128x8xf32>
    %c0_8 = arith.constant 0 : index
    %c0_9 = arith.constant 0 : index
    %23 = vector.load %arg3[%c0_8, %c0_9] : memref<8x16xf32, #tpu.memory_space<vmem>>, vector<8x16xf32>
    %cst_10 = arith.constant dense<0.000000e+00> : vector<128x16xf32>
    %24 = tpu.matmul %22, %23, %cst_10 {dimension_numbers = #tpu.dot_dimension_numbers<[1], [0], [0], [1], [0, 0, 1, 1], [], []>} : vector<128x8xf32>, vector<8x16xf32>, vector<128x16xf32> -> vector<128x16xf32>
    %cst_11 = arith.constant 0.000000e+00 : f32
    %25 = vector.broadcast %cst_11 : f32 to vector<128x16xf32>
    %26 = arith.maximumf %24, %25 : vector<128x16xf32>
    %c0_12 = arith.constant 0 : index
    %c0_13 = arith.constant 0 : index
    %27 = vector.load %arg4[%c0_12, %c0_13] : memref<16x32xf32, #tpu.memory_space<vmem>>, vector<16x32xf32>
    %cst_14 = arith.constant dense<0.000000e+00> : vector<128x32xf32>
    %28 = tpu.matmul %26, %27, %cst_14 {dimension_numbers = #tpu.dot_dimension_numbers<[1], [0], [0], [1], [0, 0, 1, 1], [], []>} : vector<128x16xf32>, vector<16x32xf32>, vector<128x32xf32> -> vector<128x32xf32>
    %c0_15 = arith.constant 0 : index
    %c0_16 = arith.constant 0 : index
    %29 = vector.load %arg5[%c0_15, %c0_16] : memref<16x4xf32, #tpu.memory_space<vmem>>, vector<16x4xf32>
    %cst_17 = arith.constant dense<0.000000e+00> : vector<128x4xf32>
    %30 = tpu.matmul %26, %29, %cst_17 {dimension_numbers = #tpu.dot_dimension_numbers<[1], [0], [0], [1], [0, 0, 1, 1], [], []>} : vector<128x16xf32>, vector<16x4xf32>, vector<128x4xf32> -> vector<128x4xf32>
    %c0_18 = arith.constant 0 : index
    %c0_19 = arith.constant 0 : index
    %31 = vector.load %arg6[%c0_18, %c0_19] : memref<1x4xf32, #tpu.memory_space<vmem>>, vector<1x4xf32>
    %32 = vector.broadcast %31 : vector<1x4xf32> to vector<128x4xf32>
    %33 = arith.addf %30, %32 : vector<128x4xf32>
    %34 = vector.broadcast %6 : vector<128x1xf32> to vector<128x32xf32>
    %35 = arith.mulf %0, %34 : vector<128x32xf32>
    %36 = arith.subf %35, %28 : vector<128x32xf32>
    %37 = arith.mulf %36, %36 : vector<128x32xf32>
    %38 = vector.shape_cast %37 : vector<128x32xf32> to vector<1x128x32xf32>
    %cst_20 = arith.constant dense<0.000000e+00> : vector<1xf32>
    %39 = vector.multi_reduction <add>, %38, %cst_20 [1, 2] : vector<1x128x32xf32> to vector<1xf32>
    %40 = vector.shape_cast %39 : vector<1xf32> to vector<1x1x1xf32>
    %41 = vector.extract %40[0, 0, 0] : f32 from vector<1x1x1xf32>
    %c0_21 = arith.constant 0 : index
    %c0_22 = arith.constant 0 : index
    %42 = vector.load %arg7[%c0_21, %c0_22] : memref<128x4xf32, #tpu.memory_space<vmem>>, vector<128x4xf32>
    tpu.vector_store %arg7[%c0_21, %c0_22], %33 {strides = array<i32>} : memref<128x4xf32, #tpu.memory_space<vmem>>, vector<128x4xf32>,
    %c0_23 = arith.constant 0 : index
    %c0_24 = arith.constant 0 : index
    %43 = vector.load %arg8[%c0_23, %c0_24] : memref<128x8xf32, #tpu.memory_space<vmem>>, vector<128x8xf32>
    tpu.vector_store %arg8[%c0_23, %c0_24], %10 {strides = array<i32>} : memref<128x8xf32, #tpu.memory_space<vmem>>, vector<128x8xf32>,
    %c0_25 = arith.constant 0 : index
    %c0_26 = arith.constant 0 : index
    %44 = vector.load %arg9[%c0_25, %c0_26] : memref<128x8xf32, #tpu.memory_space<vmem>>, vector<128x8xf32>
    tpu.vector_store %arg9[%c0_25, %c0_26], %22 {strides = array<i32>} : memref<128x8xf32, #tpu.memory_space<vmem>>, vector<128x8xf32>,
    %45 = vector.broadcast %41 : f32 to vector<8x128xf32>
    %c0_27 = arith.constant 0 : index
    %c0_28 = arith.constant 0 : index
    %46 = vector.load %arg10[%c0_27, %c0_28] : memref<8x128xf32, #tpu.memory_space<vmem>>, vector<8x128xf32>
    tpu.vector_store %arg10[%c0_27, %c0_28], %45 {strides = array<i32>} : memref<8x128xf32, #tpu.memory_space<vmem>>, vector<8x128xf32>,
    return
  }
  func.func @transform_0(%arg0: i32) -> (i32, i32) {
    %c0_i32 = arith.constant 0 : i32
    %c0_i32_0 = arith.constant 0 : i32
    return %arg0, %c0_i32 : i32, i32
  }
  func.func @transform_1(%arg0: i32) -> (i32, i32) {
    %c0_i32 = arith.constant 0 : i32
    %c0_i32_0 = arith.constant 0 : i32
    %c0_i32_1 = arith.constant 0 : i32
    return %c0_i32, %c0_i32_0 : i32, i32
  }
  func.func @transform_2(%arg0: i32) -> (i32, i32) {
    %c0_i32 = arith.constant 0 : i32
    %c0_i32_0 = arith.constant 0 : i32
    %c0_i32_1 = arith.constant 0 : i32
    return %c0_i32, %c0_i32_0 : i32, i32
  }
  func.func @transform_3(%arg0: i32) -> (i32, i32) {
    %c0_i32 = arith.constant 0 : i32
    %c0_i32_0 = arith.constant 0 : i32
    %c0_i32_1 = arith.constant 0 : i32
    return %c0_i32, %c0_i32_0 : i32, i32
  }
  func.func @transform_4(%arg0: i32) -> (i32, i32) {
    %c0_i32 = arith.constant 0 : i32
    %c0_i32_0 = arith.constant 0 : i32
    %c0_i32_1 = arith.constant 0 : i32
    return %c0_i32, %c0_i32_0 : i32, i32
  }
  func.func @transform_5(%arg0: i32) -> (i32, i32) {
    %c0_i32 = arith.constant 0 : i32
    %c0_i32_0 = arith.constant 0 : i32
    %c0_i32_1 = arith.constant 0 : i32
    return %c0_i32, %c0_i32_0 : i32, i32
  }
  func.func @transform_6(%arg0: i32) -> (i32, i32) {
    %c0_i32 = arith.constant 0 : i32
    %c0_i32_0 = arith.constant 0 : i32
    return %arg0, %c0_i32 : i32, i32
  }
  func.func @transform_7(%arg0: i32) -> (i32, i32) {
    %c0_i32 = arith.constant 0 : i32
    %c0_i32_0 = arith.constant 0 : i32
    return %arg0, %c0_i32 : i32, i32
  }
  func.func @transform_8(%arg0: i32) -> (i32, i32) {
    %c0_i32 = arith.constant 0 : i32
    %c0_i32_0 = arith.constant 0 : i32
    return %arg0, %c0_i32 : i32, i32
  }
  func.func @transform_9(%arg0: i32) -> (i32, i32) {
    %c0_i32 = arith.constant 0 : i32
    %c0_i32_0 = arith.constant 0 : i32
    return %arg0, %c0_i32 : i32, i32
  }
}

</mosaic_0001>

<llo_original>
// kernel: tpu_custom_call.1
$region0: #{tpu_custom_call.1}
  #allocation0 [shape = 'u32[]', space=smem, size = 0x4, offset = 0x4, fixed_abs, tag = 'smem constant byte address 0x4 - core index']
  #allocation1 [shape = 'u32[72,128]{1,0:T(1,128)}', space=vmem, size = 0x9000, scoped, tag = 'internal scratch']
  %s0 = inlined_call_operand.vmem [shape: f32[128,32], index: 0, kind: input, shape index: {}]
  %s1 = inlined_call_operand.vmem [shape: f32[32,8], index: 1, kind: input, shape index: {}]
  %s2 = inlined_call_operand.vmem [shape: f32[8,16], index: 2, kind: input, shape index: {}]
  %s3 = inlined_call_operand.vmem [shape: f32[16,32], index: 3, kind: input, shape index: {}]
  %s4 = inlined_call_operand.vmem [shape: f32[16,4], index: 4, kind: input, shape index: {}]
  %s5 = inlined_call_operand.vmem [shape: f32[1,4], index: 5, kind: input, shape index: {}]
  %s6 = inlined_call_operand.vmem [shape: f32[128,4], index: 6, kind: output, shape index: {0}]
  %s7 = inlined_call_operand.vmem [shape: f32[128,8], index: 7, kind: output, shape index: {1}]
  %s8 = inlined_call_operand.vmem [shape: f32[128,8], index: 8, kind: output, shape index: {2}]
  %s9 = inlined_call_operand.hbm [shape: f32[8,128], index: 9, kind: output, shape index: {3}]
  %10 = xla_tuple %s6, %s7, %s8, %s9
  %s11 = sld [smem:[#allocation0]]
  $region58: #{tpu_custom_call.1} parent=0
    _
  %s13 = ssub.s32 1, %s11
  %s14 = scalar_select 0, %s13, %s11
  $region1: #{tpu_custom_call.1} parent=0
    #allocation2 [shape = 'u8[4096]{0}', space=vmem, size = 0x1000, scoped, tag = 'output window, operand 3, single buffered']
    #allocation3 [shape = 's32[1]{0}', space=sflag, size = 0x4, scoped, tag = 'scoped memory for tpu_custom_call.1']
    %15 = vsyncpa [#allocation3], 0
    // Predicated region
    $region2: #{tpu_custom_call.1} parent=1 // pred_check
      _
    $region3: #{tpu_custom_call.1} parent=1 // pred_check_branch
      %17 = sbr.rel (0) target = $region5
    $region4: #{tpu_custom_call.1} parent=1 // pred_region
      _
    $region5: #{tpu_custom_call.1} parent=1 // pred_fallthru
      _
    // Predicated region
    $region6: #{tpu_custom_call.1} parent=1 // pred_check
      _
    $region7: #{tpu_custom_call.1} parent=1 // pred_check_branch
      %19 = sbr.rel (0) target = $region9
    $region8: #{tpu_custom_call.1} parent=1 // pred_region
      _
    $region9: #{tpu_custom_call.1} parent=1 // pred_fallthru
      _
    // Predicated region
    $region10: #{tpu_custom_call.1} parent=1 // pred_check
      _
    $region11: #{tpu_custom_call.1} parent=1 // pred_check_branch
      %21 = sbr.rel (0) target = $region13
    $region12: #{tpu_custom_call.1} parent=1 // pred_region
      _
    $region13: #{tpu_custom_call.1} parent=1 // pred_fallthru
      _
    // Predicated region
    $region14: #{tpu_custom_call.1} parent=1 // pred_check
      _
    $region15: #{tpu_custom_call.1} parent=1 // pred_check_branch
      %23 = sbr.rel (0) target = $region17
    $region16: #{tpu_custom_call.1} parent=1 // pred_region
      _
    $region17: #{tpu_custom_call.1} parent=1 // pred_fallthru
      _
    // Predicated region
    $region18: #{tpu_custom_call.1} parent=1 // pred_check
      _
    $region19: #{tpu_custom_call.1} parent=1 // pred_check_branch
      %25 = sbr.rel (0) target = $region21
    $region20: #{tpu_custom_call.1} parent=1 // pred_region
      _
    $region21: #{tpu_custom_call.1} parent=1 // pred_fallthru
      _
    // Predicated region
    $region22: #{tpu_custom_call.1} parent=1 // pred_check
      _
    $region23: #{tpu_custom_call.1} parent=1 // pred_check_branch
      %27 = sbr.rel (0) target = $region25
    $region24: #{tpu_custom_call.1} parent=1 // pred_region
      _
    $region25: #{tpu_custom_call.1} parent=1 // pred_fallthru
      _
    %v28 = vld [vmem:[%s0] sm:$0xff]
    %v29 = vld [vmem:[%s0 + $0x8] sm:$0xff]
    %v30 = vld [vmem:[%s0 + $0x10] sm:$0xff]
    %v31 = vld [vmem:[%s0 + $0x18] sm:$0xff]
    %v32 = vld [vmem:[%s0 + $0x20] sm:$0xff]
    %v33 = vld [vmem:[%s0 + $0x28] sm:$0xff]
    %v34 = vld [vmem:[%s0 + $0x30] sm:$0xff]
    %v35 = vld [vmem:[%s0 + $0x38] sm:$0xff]
    %v36 = vld [vmem:[%s0 + $0x40] sm:$0xff]
    %v37 = vld [vmem:[%s0 + $0x48] sm:$0xff]
    %v38 = vld [vmem:[%s0 + $0x50] sm:$0xff]
    %v39 = vld [vmem:[%s0 + $0x58] sm:$0xff]
    %v40 = vld [vmem:[%s0 + $0x60] sm:$0xff]
    %v41 = vld [vmem:[%s0 + $0x68] sm:$0xff]
    %v42 = vld [vmem:[%s0 + $0x70] sm:$0xff]
    %v43 = vld [vmem:[%s0 + $0x78] sm:$0xff]
    %v44 = vmul.f32 %v28, %v28
    %v45 = vmul.f32 %v29, %v29
    %v46 = vmul.f32 %v30, %v30
    %v47 = vmul.f32 %v31, %v31
    %v48 = vmul.f32 %v32, %v32
    %v49 = vmul.f32 %v33, %v33
    %v50 = vmul.f32 %v34, %v34
    %v51 = vmul.f32 %v35, %v35
    %v52 = vmul.f32 %v36, %v36
    %v53 = vmul.f32 %v37, %v37
    %v54 = vmul.f32 %v38, %v38
    %v55 = vmul.f32 %v39, %v39
    %v56 = vmul.f32 %v40, %v40
    %v57 = vmul.f32 %v41, %v41
    %v58 = vmul.f32 %v42, %v42
    %v59 = vmul.f32 %v43, %v43
    %vm60 = vcmask 261120
    %v61 = vsel %vm60, %v44, 0.0
    %62 = vadd.xlane.f32.xlu0 %v61
    %v63 = vpop.xlane.xlu0 %62
    %v64 = vsel %vm60, %v45, 0.0
    %65 = vadd.xlane.f32.xlu0 %v64
    %v66 = vpop.xlane.xlu0 %65
    %v67 = vsel %vm60, %v46, 0.0
    %68 = vadd.xlane.f32.xlu0 %v67
    %v69 = vpop.xlane.xlu0 %68
    %v70 = vsel %vm60, %v47, 0.0
    %71 = vadd.xlane.f32.xlu0 %v70
    %v72 = vpop.xlane.xlu0 %71
    %v73 = vsel %vm60, %v48, 0.0
    %74 = vadd.xlane.f32.xlu0 %v73
    %v75 = vpop.xlane.xlu0 %74
    %v76 = vsel %vm60, %v49, 0.0
    %77 = vadd.xlane.f32.xlu0 %v76
    %v78 = vpop.xlane.xlu0 %77
    %v79 = vsel %vm60, %v50, 0.0
    %80 = vadd.xlane.f32.xlu0 %v79
    %v81 = vpop.xlane.xlu0 %80
    %v82 = vsel %vm60, %v51, 0.0
    %83 = vadd.xlane.f32.xlu0 %v82
    %v84 = vpop.xlane.xlu0 %83
    %v85 = vsel %vm60, %v52, 0.0
    %86 = vadd.xlane.f32.xlu0 %v85
    %v87 = vpop.xlane.xlu0 %86
    %v88 = vsel %vm60, %v53, 0.0
    %89 = vadd.xlane.f32.xlu0 %v88
    %v90 = vpop.xlane.xlu0 %89
    %v91 = vsel %vm60, %v54, 0.0
    %92 = vadd.xlane.f32.xlu0 %v91
    %v93 = vpop.xlane.xlu0 %92
    %v94 = vsel %vm60, %v55, 0.0
    %95 = vadd.xlane.f32.xlu0 %v94
    %v96 = vpop.xlane.xlu0 %95
    %v97 = vsel %vm60, %v56, 0.0
    %98 = vadd.xlane.f32.xlu0 %v97
    %v99 = vpop.xlane.xlu0 %98
    %v100 = vsel %vm60, %v57, 0.0
    %101 = vadd.xlane.f32.xlu0 %v100
    %v102 = vpop.xlane.xlu0 %101
    %v103 = vsel %vm60, %v58, 0.0
    %104 = vadd.xlane.f32.xlu0 %v103
    %v105 = vpop.xlane.xlu0 %104
    %v106 = vsel %vm60, %v59, 0.0
    %107 = vadd.xlane.f32.xlu0 %v106
    %v108 = vpop.xlane.xlu0 %107
    %v109 = vmax.f32 %v63, 1e-24
    %v110 = vmax.f32 %v66, 1e-24
    %v111 = vmax.f32 %v69, 1e-24
    %v112 = vmax.f32 %v72, 1e-24
    %v113 = vmax.f32 %v75, 1e-24
    %v114 = vmax.f32 %v78, 1e-24
    %v115 = vmax.f32 %v81, 1e-24
    %v116 = vmax.f32 %v84, 1e-24
    %v117 = vmax.f32 %v87, 1e-24
    %v118 = vmax.f32 %v90, 1e-24
    %v119 = vmax.f32 %v93, 1e-24
    %v120 = vmax.f32 %v96, 1e-24
    %v121 = vmax.f32 %v99, 1e-24
    %v122 = vmax.f32 %v102, 1e-24
    %v123 = vmax.f32 %v105, 1e-24
    %v124 = vmax.f32 %v108, 1e-24
    %v125 = vrsqrt.pop %v109
    %v126 = vmul.f32 %v125, %v109
    %v127 = vmul.f32 %v126, %v125
    %v128 = vmul.f32 0.5, %v127
    %v129 = vsub.f32 1.5, %v128
    %v130 = vmul.f32 %v125, %v129
    %vm131 = vweird.f32 %v109
    %vm132 = vweird.f32 %v125
    %vm133 = vmor %vm131, %vm132
    %v134 = vsel %vm133, %v125, %v130
    %v135 = vrsqrt.pop %v110
    %v136 = vmul.f32 %v135, %v110
    %v137 = vmul.f32 %v136, %v135
    %v138 = vmul.f32 0.5, %v137
    %v139 = vsub.f32 1.5, %v138
    %v140 = vmul.f32 %v135, %v139
    %vm141 = vweird.f32 %v110
    %vm142 = vweird.f32 %v135
    %vm143 = vmor %vm141, %vm142
    %v144 = vsel %vm143, %v135, %v140
    %v145 = vrsqrt.pop %v111
    %v146 = vmul.f32 %v145, %v111
    %v147 = vmul.f32 %v146, %v145
    %v148 = vmul.f32 0.5, %v147
    %v149 = vsub.f32 1.5, %v148
    %v150 = vmul.f32 %v145, %v149
    %vm151 = vweird.f32 %v111
    %vm152 = vweird.f32 %v145
    %vm153 = vmor %vm151, %vm152
    %v154 = vsel %vm153, %v145, %v150
    %v155 = vrsqrt.pop %v112
    %v156 = vmul.f32 %v155, %v112
    %v157 = vmul.f32 %v156, %v155
    %v158 = vmul.f32 0.5, %v157
    %v159 = vsub.f32 1.5, %v158
    %v160 = vmul.f32 %v155, %v159
    %vm161 = vweird.f32 %v112
    %vm162 = vweird.f32 %v155
    %vm163 = vmor %vm161, %vm162
    %v164 = vsel %vm163, %v155, %v160
    %v165 = vrsqrt.pop %v113
    %v166 = vmul.f32 %v165, %v113
    %v167 = vmul.f32 %v166, %v165
    %v168 = vmul.f32 0.5, %v167
    %v169 = vsub.f32 1.5, %v168
    %v170 = vmul.f32 %v165, %v169
    %vm171 = vweird.f32 %v113
    %vm172 = vweird.f32 %v165
    %vm173 = vmor %vm171, %vm172
    %v174 = vsel %vm173, %v165, %v170
    %v175 = vrsqrt.pop %v114
    %v176 = vmul.f32 %v175, %v114
    %v177 = vmul.f32 %v176, %v175
    %v178 = vmul.f32 0.5, %v177
    %v179 = vsub.f32 1.5, %v178
    %v180 = vmul.f32 %v175, %v179
    %vm181 = vweird.f32 %v114
    %vm182 = vweird.f32 %v175
    %vm183 = vmor %vm181, %vm182
    %v184 = vsel %vm183, %v175, %v180
    %v185 = vrsqrt.pop %v115
    %v186 = vmul.f32 %v185, %v115
    %v187 = vmul.f32 %v186, %v185
    %v188 = vmul.f32 0.5, %v187
    %v189 = vsub.f32 1.5, %v188
    %v190 = vmul.f32 %v185, %v189
    %vm191 = vweird.f32 %v115
    %vm192 = vweird.f32 %v185
    %vm193 = vmor %vm191, %vm192
    %v194 = vsel %vm193, %v185, %v190
    %v195 = vrsqrt.pop %v116
    %v196 = vmul.f32 %v195, %v116
    %v197 = vmul.f32 %v196, %v195
    %v198 = vmul.f32 0.5, %v197
    %v199 = vsub.f32 1.5, %v198
    %v200 = vmul.f32 %v195, %v199
    %vm201 = vweird.f32 %v116
    %vm202 = vweird.f32 %v195
    %vm203 = vmor %vm201, %vm202
    %v204 = vsel %vm203, %v195, %v200
    %v205 = vrsqrt.pop %v117
    %v206 = vmul.f32 %v205, %v117
    %v207 = vmul.f32 %v206, %v205
    %v208 = vmul.f32 0.5, %v207
    %v209 = vsub.f32 1.5, %v208
    %v210 = vmul.f32 %v205, %v209
    %vm211 = vweird.f32 %v117
    %vm212 = vweird.f32 %v205
    %vm213 = vmor %vm211, %vm212
    %v214 = vsel %vm213, %v205, %v210
    %v215 = vrsqrt.pop %v118
    %v216 = vmul.f32 %v215, %v118
    %v217 = vmul.f32 %v216, %v215
    %v218 = vmul.f32 0.5, %v217
    %v219 = vsub.f32 1.5, %v218
    %v220 = vmul.f32 %v215, %v219
    %vm221 = vweird.f32 %v118
    %vm222 = vweird.f32 %v215
    %vm223 = vmor %vm221, %vm222
    %v224 = vsel %vm223, %v215, %v220
    %v225 = vrsqrt.pop %v119
    %v226 = vmul.f32 %v225, %v119
    %v227 = vmul.f32 %v226, %v225
    %v228 = vmul.f32 0.5, %v227
    %v229 = vsub.f32 1.5, %v228
    %v230 = vmul.f32 %v225, %v229
    %vm231 = vweird.f32 %v119
    %vm232 = vweird.f32 %v225
    %vm233 = vmor %vm231, %vm232
    %v234 = vsel %vm233, %v225, %v230
    %v235 = vrsqrt.pop %v120
    %v236 = vmul.f32 %v235, %v120
    %v237 = vmul.f32 %v236, %v235
    %v238 = vmul.f32 0.5, %v237
    %v239 = vsub.f32 1.5, %v238
    %v240 = vmul.f32 %v235, %v239
    %vm241 = vweird.f32 %v120
    %vm242 = vweird.f32 %v235
    %vm243 = vmor %vm241, %vm242
    %v244 = vsel %vm243, %v235, %v240
    %v245 = vrsqrt.pop %v121
    %v246 = vmul.f32 %v245, %v121
    %v247 = vmul.f32 %v246, %v245
    %v248 = vmul.f32 0.5, %v247
    %v249 = vsub.f32 1.5, %v248
    %v250 = vmul.f32 %v245, %v249
    %vm251 = vweird.f32 %v121
    %vm252 = vweird.f32 %v245
    %vm253 = vmor %vm251, %vm252
    %v254 = vsel %vm253, %v245, %v250
    %v255 = vrsqrt.pop %v122
    %v256 = vmul.f32 %v255, %v122
    %v257 = vmul.f32 %v256, %v255
    %v258 = vmul.f32 0.5, %v257
    %v259 = vsub.f32 1.5, %v258
    %v260 = vmul.f32 %v255, %v259
    %vm261 = vweird.f32 %v122
    %vm262 = vweird.f32 %v255
    %vm263 = vmor %vm261, %vm262
    %v264 = vsel %vm263, %v255, %v260
    %v265 = vrsqrt.pop %v123
    %v266 = vmul.f32 %v265, %v123
    %v267 = vmul.f32 %v266, %v265
    %v268 = vmul.f32 0.5, %v267
    %v269 = vsub.f32 1.5, %v268
    %v270 = vmul.f32 %v265, %v269
    %vm271 = vweird.f32 %v123
    %vm272 = vweird.f32 %v265
    %vm273 = vmor %vm271, %vm272
    %v274 = vsel %vm273, %v265, %v270
    %v275 = vrsqrt.pop %v124
    %v276 = vmul.f32 %v275, %v124
    %v277 = vmul.f32 %v276, %v275
    %v278 = vmul.f32 0.5, %v277
    %v279 = vsub.f32 1.5, %v278
    %v280 = vmul.f32 %v275, %v279
    %vm281 = vweird.f32 %v124
    %vm282 = vweird.f32 %v275
    %vm283 = vmor %vm281, %vm282
    %v284 = vsel %vm283, %v275, %v280
    %v285 = vld [vmem:[%s1] sm:$0xff]
    %v286 = vld [vmem:[%s1 + $0x8] sm:$0xff]
    %v287 = vld [vmem:[%s1 + $0x10] sm:$0xff]
    %v288 = vld [vmem:[%s1 + $0x18] sm:$0xff]
    %v290 = vsel %vm60, %v28, 0
    %v293 = vsel %vm60, %v29, 0
    %v296 = vsel %vm60, %v30, 0
    %v299 = vsel %vm60, %v31, 0
    %v302 = vsel %vm60, %v32, 0
    %v305 = vsel %vm60, %v33, 0
    %v308 = vsel %vm60, %v34, 0
    %v311 = vsel %vm60, %v35, 0
    %v314 = vsel %vm60, %v36, 0
    %v317 = vsel %vm60, %v37, 0
    %v320 = vsel %vm60, %v38, 0
    %v323 = vsel %vm60, %v39, 0
    %v326 = vsel %vm60, %v40, 0
    %v329 = vsel %vm60, %v41, 0
    %v332 = vsel %vm60, %v42, 0
    %v335 = vsel %vm60, %v43, 0
    %337 = vmatpush.msra.mxu0 0.0
    %338 = vmatpush.msra.mxu0 0.0
    %339 = vmatpush.msra.mxu0 0.0
    %340 = vmatpush.msra.mxu0 0.0
    %341 = vmatpush.msra.mxu0 0.0
    %342 = vmatpush.msra.mxu0 0.0
    %343 = vmatpush.msra.mxu0 0.0
    %344 = vmatpush.msra.mxu0 0.0
    %345 = vmatpush.msra.mxu0 0.0
    %346 = vmatpush.msra.mxu0 0.0
    %347 = vmatpush.msra.mxu0 0.0
    %348 = vmatpush.msra.mxu0 0.0
    %349 = vmatpush.msra.mxu0 %v288
    %350 = vmatpush.msra.mxu0 %v287
    %351 = vmatpush.msra.mxu0 %v286
    %352 = vmatpush.msra.mxu0 %v285
    %353 = vmatmul.f32.gmra.mxu0 %v290
    %v354 = vpop.f32.mrf.mxu0
    %v355 = vadd.f32 0.0, %v354
    %356 = vmatmul.f32.gmra.mxu0 %v293
    %v357 = vpop.f32.mrf.mxu0
    %v358 = vadd.f32 0.0, %v357
    %359 = vmatmul.f32.gmra.mxu0 %v296
    %v360 = vpop.f32.mrf.mxu0
    %v361 = vadd.f32 0.0, %v360
    %362 = vmatmul.f32.gmra.mxu0 %v299
    %v363 = vpop.f32.mrf.mxu0
    %v364 = vadd.f32 0.0, %v363
    %365 = vmatmul.f32.gmra.mxu0 %v302
    %v366 = vpop.f32.mrf.mxu0
    %v367 = vadd.f32 0.0, %v366
    %368 = vmatmul.f32.gmra.mxu0 %v305
    %v369 = vpop.f32.mrf.mxu0
    %v370 = vadd.f32 0.0, %v369
    %371 = vmatmul.f32.gmra.mxu0 %v308
    %v372 = vpop.f32.mrf.mxu0
    %v373 = vadd.f32 0.0, %v372
    %374 = vmatmul.f32.gmra.mxu0 %v311
    %v375 = vpop.f32.mrf.mxu0
    %v376 = vadd.f32 0.0, %v375
    %377 = vmatmul.f32.gmra.mxu0 %v314
    %v378 = vpop.f32.mrf.mxu0
    %v379 = vadd.f32 0.0, %v378
    %380 = vmatmul.f32.gmra.mxu0 %v317
    %v381 = vpop.f32.mrf.mxu0
    %v382 = vadd.f32 0.0, %v381
    %383 = vmatmul.f32.gmra.mxu0 %v320
    %v384 = vpop.f32.mrf.mxu0
    %v385 = vadd.f32 0.0, %v384
    %386 = vmatmul.f32.gmra.mxu0 %v323
    %v387 = vpop.f32.mrf.mxu0
    %v388 = vadd.f32 0.0, %v387
    %389 = vmatmul.f32.gmra.mxu0 %v326
    %v390 = vpop.f32.mrf.mxu0
    %v391 = vadd.f32 0.0, %v390
    %392 = vmatmul.f32.gmra.mxu0 %v329
    %v393 = vpop.f32.mrf.mxu0
    %v394 = vadd.f32 0.0, %v393
    %395 = vmatmul.f32.gmra.mxu0 %v332
    %v396 = vpop.f32.mrf.mxu0
    %v397 = vadd.f32 0.0, %v396
    %398 = vmatmul.f32.gmra.mxu0 %v335
    %v399 = vpop.f32.mrf.mxu0
    %v400 = vadd.f32 0.0, %v399
    %401 = vdwg.mxu0
    %v402 = vmul.f32 %v355, %v134
    %v403 = vmul.f32 %v358, %v144
    %v404 = vmul.f32 %v361, %v154
    %v405 = vmul.f32 %v364, %v164
    %v406 = vmul.f32 %v367, %v174
    %v407 = vmul.f32 %v370, %v184
    %v408 = vmul.f32 %v373, %v194
    %v409 = vmul.f32 %v376, %v204
    %v410 = vmul.f32 %v379, %v214
    %v411 = vmul.f32 %v382, %v224
    %v412 = vmul.f32 %v385, %v234
    %v413 = vmul.f32 %v388, %v244
    %v414 = vmul.f32 %v391, %v254
    %v415 = vmul.f32 %v394, %v264
    %v416 = vmul.f32 %v397, %v274
    %v417 = vmul.f32 %v400, %v284
    %vm418 = vcmp.gt.f32.partialorder %v402, 0.3
    %vm419 = vcmp.gt.f32.partialorder %v403, 0.3
    %vm420 = vcmp.gt.f32.partialorder %v404, 0.3
    %vm421 = vcmp.gt.f32.partialorder %v405, 0.3
    %vm422 = vcmp.gt.f32.partialorder %v406, 0.3
    %vm423 = vcmp.gt.f32.partialorder %v407, 0.3
    %vm424 = vcmp.gt.f32.partialorder %v408, 0.3
    %vm425 = vcmp.gt.f32.partialorder %v409, 0.3
    %vm426 = vcmp.gt.f32.partialorder %v410, 0.3
    %vm427 = vcmp.gt.f32.partialorder %v411, 0.3
    %vm428 = vcmp.gt.f32.partialorder %v412, 0.3
    %vm429 = vcmp.gt.f32.partialorder %v413, 0.3
    %vm430 = vcmp.gt.f32.partialorder %v414, 0.3
    %vm431 = vcmp.gt.f32.partialorder %v415, 0.3
    %vm432 = vcmp.gt.f32.partialorder %v416, 0.3
    %vm433 = vcmp.gt.f32.partialorder %v417, 0.3
    %v434 = vsel %vm418, 1, 0
    %v435 = vsel %vm419, 1, 0
    %v436 = vsel %vm420, 1, 0
    %v437 = vsel %vm421, 1, 0
    %v438 = vsel %vm422, 1, 0
    %v439 = vsel %vm423, 1, 0
    %v440 = vsel %vm424, 1, 0
    %v441 = vsel %vm425, 1, 0
    %v442 = vsel %vm426, 1, 0
    %v443 = vsel %vm427, 1, 0
    %v444 = vsel %vm428, 1, 0
    %v445 = vsel %vm429, 1, 0
    %v446 = vsel %vm430, 1, 0
    %v447 = vsel %vm431, 1, 0
    %v448 = vsel %vm432, 1, 0
    %v449 = vsel %vm433, 1, 0
    %v450 = vcvt.s32.f32 %v434
    %v451 = vcvt.s32.f32 %v435
    %v452 = vcvt.s32.f32 %v436
    %v453 = vcvt.s32.f32 %v437
    %v454 = vcvt.s32.f32 %v438
    %v455 = vcvt.s32.f32 %v439
    %v456 = vcvt.s32.f32 %v440
    %v457 = vcvt.s32.f32 %v441
    %v458 = vcvt.s32.f32 %v442
    %v459 = vcvt.s32.f32 %v443
    %v460 = vcvt.s32.f32 %v444
    %v461 = vcvt.s32.f32 %v445
    %v462 = vcvt.s32.f32 %v446
    %v463 = vcvt.s32.f32 %v447
    %v464 = vcvt.s32.f32 %v448
    %v465 = vcvt.s32.f32 %v449
    %v466 = vmul.f32 %v355, %v450
    %v467 = vmul.f32 %v358, %v451
    %v468 = vmul.f32 %v361, %v452
    %v469 = vmul.f32 %v364, %v453
    %v470 = vmul.f32 %v367, %v454
    %v471 = vmul.f32 %v370, %v455
    %v472 = vmul.f32 %v373, %v456
    %v473 = vmul.f32 %v376, %v457
    %v474 = vmul.f32 %v379, %v458
    %v475 = vmul.f32 %v382, %v459
    %v476 = vmul.f32 %v385, %v460
    %v477 = vmul.f32 %v388, %v461
    %v478 = vmul.f32 %v391, %v462
    %v479 = vmul.f32 %v394, %v463
    %v480 = vmul.f32 %v397, %v464
    %v481 = vmul.f32 %v400, %v465
    %vm482 = vcmask 64512
    %v483 = vsel %vm482, %v466, 0.0
    %484 = vadd.xlane.f32.xlu0 %v483
    %v485 = vpop.xlane.xlu0 %484
    %v486 = vsel %vm482, %v467, 0.0
    %487 = vadd.xlane.f32.xlu0 %v486
    %v488 = vpop.xlane.xlu0 %487
    %v489 = vsel %vm482, %v468, 0.0
    %490 = vadd.xlane.f32.xlu0 %v489
    %v491 = vpop.xlane.xlu0 %490
    %v492 = vsel %vm482, %v469, 0.0
    %493 = vadd.xlane.f32.xlu0 %v492
    %v494 = vpop.xlane.xlu0 %493
    %v495 = vsel %vm482, %v470, 0.0
    %496 = vadd.xlane.f32.xlu0 %v495
    %v497 = vpop.xlane.xlu0 %496
    %v498 = vsel %vm482, %v471, 0.0
    %499 = vadd.xlane.f32.xlu0 %v498
    %v500 = vpop.xlane.xlu0 %499
    %v501 = vsel %vm482, %v472, 0.0
    %502 = vadd.xlane.f32.xlu0 %v501
    %v503 = vpop.xlane.xlu0 %502
    %v504 = vsel %vm482, %v473, 0.0
    %505 = vadd.xlane.f32.xlu0 %v504
    %v506 = vpop.xlane.xlu0 %505
    %v507 = vsel %vm482, %v474, 0.0
    %508 = vadd.xlane.f32.xlu0 %v507
    %v509 = vpop.xlane.xlu0 %508
    %v510 = vsel %vm482, %v475, 0.0
    %511 = vadd.xlane.f32.xlu0 %v510
    %v512 = vpop.xlane.xlu0 %511
    %v513 = vsel %vm482, %v476, 0.0
    %514 = vadd.xlane.f32.xlu0 %v513
    %v515 = vpop.xlane.xlu0 %514
    %v516 = vsel %vm482, %v477, 0.0
    %517 = vadd.xlane.f32.xlu0 %v516
    %v518 = vpop.xlane.xlu0 %517
    %v519 = vsel %vm482, %v478, 0.0
    %520 = vadd.xlane.f32.xlu0 %v519
    %v521 = vpop.xlane.xlu0 %520
    %v522 = vsel %vm482, %v479, 0.0
    %523 = vadd.xlane.f32.xlu0 %v522
    %v524 = vpop.xlane.xlu0 %523
    %v525 = vsel %vm482, %v480, 0.0
    %526 = vadd.xlane.f32.xlu0 %v525
    %v527 = vpop.xlane.xlu0 %526
    %v528 = vsel %vm482, %v481, 0.0
    %529 = vadd.xlane.f32.xlu0 %v528
    %v530 = vpop.xlane.xlu0 %529
    %v531 = vadd.f32 %v485, 0.001
    %v532 = vadd.f32 %v488, 0.001
    %v533 = vadd.f32 %v491, 0.001
    %v534 = vadd.f32 %v494, 0.001
    %v535 = vadd.f32 %v497, 0.001
    %v536 = vadd.f32 %v500, 0.001
    %v537 = vadd.f32 %v503, 0.001
    %v538 = vadd.f32 %v506, 0.001
    %v539 = vadd.f32 %v509, 0.001
    %v540 = vadd.f32 %v512, 0.001
    %v541 = vadd.f32 %v515, 0.001
    %v542 = vadd.f32 %v518, 0.001
    %v543 = vadd.f32 %v521, 0.001
    %v544 = vadd.f32 %v524, 0.001
    %v545 = vadd.f32 %v527, 0.001
    %v546 = vadd.f32 %v530, 0.001
    %v547 = vrcp.pop %v531
    %v548 = vrcp.pop %v532
    %v549 = vrcp.pop %v533
    %v550 = vrcp.pop %v534
    %v551 = vrcp.pop %v535
    %v552 = vrcp.pop %v536
    %v553 = vrcp.pop %v537
    %v554 = vrcp.pop %v538
    %v555 = vrcp.pop %v539
    %v556 = vrcp.pop %v540
    %v557 = vrcp.pop %v541
    %v558 = vrcp.pop %v542
    %v559 = vrcp.pop %v543
    %v560 = vrcp.pop %v544
    %v561 = vrcp.pop %v545
    %v562 = vrcp.pop %v546
    %v563 = vmul.f32 %v466, %v547
    %v564 = vmul.f32 %v467, %v548
    %v565 = vmul.f32 %v468, %v549
    %v566 = vmul.f32 %v469, %v550
    %v567 = vmul.f32 %v470, %v551
    %v568 = vmul.f32 %v471, %v552
    %v569 = vmul.f32 %v472, %v553
    %v570 = vmul.f32 %v473, %v554
    %v571 = vmul.f32 %v474, %v555
    %v572 = vmul.f32 %v475, %v556
    %v573 = vmul.f32 %v476, %v557
    %v574 = vmul.f32 %v477, %v558
    %v575 = vmul.f32 %v478, %v559
    %v576 = vmul.f32 %v479, %v560
    %v577 = vmul.f32 %v480, %v561
    %v578 = vmul.f32 %v481, %v562
    %v579 = vld [vmem:[%s2] sm:$0xff]
    %v581 = vsel %vm482, %v563, 0
    %v584 = vsel %vm482, %v564, 0
    %v587 = vsel %vm482, %v565, 0
    %v590 = vsel %vm482, %v566, 0
    %v593 = vsel %vm482, %v567, 0
    %v596 = vsel %vm482, %v568, 0
    %v599 = vsel %vm482, %v569, 0
    %v602 = vsel %vm482, %v570, 0
    %v605 = vsel %vm482, %v571, 0
    %v608 = vsel %vm482, %v572, 0
    %v611 = vsel %vm482, %v573, 0
    %v614 = vsel %vm482, %v574, 0
    %v617 = vsel %vm482, %v575, 0
    %v620 = vsel %vm482, %v576, 0
    %v623 = vsel %vm482, %v577, 0
    %v626 = vsel %vm482, %v578, 0
    %628 = vmatpush.msra.mxu0 0.0
    %629 = vmatpush.msra.mxu0 0.0
    %630 = vmatpush.msra.mxu0 0.0
    %631 = vmatpush.msra.mxu0 0.0
    %632 = vmatpush.msra.mxu0 0.0
    %633 = vmatpush.msra.mxu0 0.0
    %634 = vmatpush.msra.mxu0 0.0
    %635 = vmatpush.msra.mxu0 0.0
    %636 = vmatpush.msra.mxu0 0.0
    %637 = vmatpush.msra.mxu0 0.0
    %638 = vmatpush.msra.mxu0 0.0
    %639 = vmatpush.msra.mxu0 0.0
    %640 = vmatpush.msra.mxu0 0.0
    %641 = vmatpush.msra.mxu0 0.0
    %642 = vmatpush.msra.mxu0 0.0
    %643 = vmatpush.msra.mxu0 %v579
    %644 = vmatmul.f32.gmra.mxu0 %v581
    %v645 = vpop.f32.mrf.mxu0
    %v646 = vadd.f32 0.0, %v645
    %647 = vmatmul.f32.gmra.mxu0 %v584
    %v648 = vpop.f32.mrf.mxu0
    %v649 = vadd.f32 0.0, %v648
    %650 = vmatmul.f32.gmra.mxu0 %v587
    %v651 = vpop.f32.mrf.mxu0
    %v652 = vadd.f32 0.0, %v651
    %653 = vmatmul.f32.gmra.mxu0 %v590
    %v654 = vpop.f32.mrf.mxu0
    %v655 = vadd.f32 0.0, %v654
    %656 = vmatmul.f32.gmra.mxu0 %v593
    %v657 = vpop.f32.mrf.mxu0
    %v658 = vadd.f32 0.0, %v657
    %659 = vmatmul.f32.gmra.mxu0 %v596
    %v660 = vpop.f32.mrf.mxu0
    %v661 = vadd.f32 0.0, %v660
    %662 = vmatmul.f32.gmra.mxu0 %v599
    %v663 = vpop.f32.mrf.mxu0
    %v664 = vadd.f32 0.0, %v663
    %665 = vmatmul.f32.gmra.mxu0 %v602
    %v666 = vpop.f32.mrf.mxu0
    %v667 = vadd.f32 0.0, %v666
    %668 = vmatmul.f32.gmra.mxu0 %v605
    %v669 = vpop.f32.mrf.mxu0
    %v670 = vadd.f32 0.0, %v669
    %671 = vmatmul.f32.gmra.mxu0 %v608
    %v672 = vpop.f32.mrf.mxu0
    %v673 = vadd.f32 0.0, %v672
    %674 = vmatmul.f32.gmra.mxu0 %v611
    %v675 = vpop.f32.mrf.mxu0
    %v676 = vadd.f32 0.0, %v675
    %677 = vmatmul.f32.gmra.mxu0 %v614
    %v678 = vpop.f32.mrf.mxu0
    %v679 = vadd.f32 0.0, %v678
    %680 = vmatmul.f32.gmra.mxu0 %v617
    %v681 = vpop.f32.mrf.mxu0
    %v682 = vadd.f32 0.0, %v681
    %683 = vmatmul.f32.gmra.mxu0 %v620
    %v684 = vpop.f32.mrf.mxu0
    %v685 = vadd.f32 0.0, %v684
    %686 = vmatmul.f32.gmra.mxu0 %v623
    %v687 = vpop.f32.mrf.mxu0
    %v688 = vadd.f32 0.0, %v687
    %689 = vmatmul.f32.gmra.mxu0 %v626
    %v690 = vpop.f32.mrf.mxu0
    %v691 = vadd.f32 0.0, %v690
    %692 = vdwg.mxu0
    %v693 = vmax.f32 %v646, 0.0
    %v694 = vmax.f32 %v649, 0.0
    %v695 = vmax.f32 %v652, 0.0
    %v696 = vmax.f32 %v655, 0.0
    %v697 = vmax.f32 %v658, 0.0
    %v698 = vmax.f32 %v661, 0.0
    %v699 = vmax.f32 %v664, 0.0
    %v700 = vmax.f32 %v667, 0.0
    %v701 = vmax.f32 %v670, 0.0
    %v702 = vmax.f32 %v673, 0.0
    %v703 = vmax.f32 %v676, 0.0
    %v704 = vmax.f32 %v679, 0.0
    %v705 = vmax.f32 %v682, 0.0
    %v706 = vmax.f32 %v685, 0.0
    %v707 = vmax.f32 %v688, 0.0
    %v708 = vmax.f32 %v691, 0.0
    %v709 = vld [vmem:[%s3] sm:$0xff]
    %v710 = vld [vmem:[%s3 + $0x8] sm:$0xff]
    %vm711 = vcmask 130048
    %v713 = vsel %vm711, %v693, 0
    %v716 = vsel %vm711, %v694, 0
    %v719 = vsel %vm711, %v695, 0
    %v722 = vsel %vm711, %v696, 0
    %v725 = vsel %vm711, %v697, 0
    %v728 = vsel %vm711, %v698, 0
    %v731 = vsel %vm711, %v699, 0
    %v734 = vsel %vm711, %v700, 0
    %v737 = vsel %vm711, %v701, 0
    %v740 = vsel %vm711, %v702, 0
    %v743 = vsel %vm711, %v703, 0
    %v746 = vsel %vm711, %v704, 0
    %v749 = vsel %vm711, %v705, 0
    %v752 = vsel %vm711, %v706, 0
    %v755 = vsel %vm711, %v707, 0
    %v758 = vsel %vm711, %v708, 0
    %760 = vmatpush.msra.mxu0 0.0
    %761 = vmatpush.msra.mxu0 0.0
    %762 = vmatpush.msra.mxu0 0.0
    %763 = vmatpush.msra.mxu0 0.0
    %764 = vmatpush.msra.mxu0 0.0
    %765 = vmatpush.msra.mxu0 0.0
    %766 = vmatpush.msra.mxu0 0.0
    %767 = vmatpush.msra.mxu0 0.0
    %768 = vmatpush.msra.mxu0 0.0
    %769 = vmatpush.msra.mxu0 0.0
    %770 = vmatpush.msra.mxu0 0.0
    %771 = vmatpush.msra.mxu0 0.0
    %772 = vmatpush.msra.mxu0 0.0
    %773 = vmatpush.msra.mxu0 0.0
    %774 = vmatpush.msra.mxu0 %v710
    %775 = vmatpush.msra.mxu0 %v709
    %776 = vmatmul.f32.gmra.mxu0 %v713
    %v777 = vpop.f32.mrf.mxu0
    %v778 = vadd.f32 0.0, %v777
    %779 = vmatmul.f32.gmra.mxu0 %v716
    %v780 = vpop.f32.mrf.mxu0
    %v781 = vadd.f32 0.0, %v780
    %782 = vmatmul.f32.gmra.mxu0 %v719
    %v783 = vpop.f32.mrf.mxu0
    %v784 = vadd.f32 0.0, %v783
    %785 = vmatmul.f32.gmra.mxu0 %v722
    %v786 = vpop.f32.mrf.mxu0
    %v787 = vadd.f32 0.0, %v786
    %788 = vmatmul.f32.gmra.mxu0 %v725
    %v789 = vpop.f32.mrf.mxu0
    %v790 = vadd.f32 0.0, %v789
    %791 = vmatmul.f32.gmra.mxu0 %v728
    %v792 = vpop.f32.mrf.mxu0
    %v793 = vadd.f32 0.0, %v792
    %794 = vmatmul.f32.gmra.mxu0 %v731
    %v795 = vpop.f32.mrf.mxu0
    %v796 = vadd.f32 0.0, %v795
    %797 = vmatmul.f32.gmra.mxu0 %v734
    %v798 = vpop.f32.mrf.mxu0
    %v799 = vadd.f32 0.0, %v798
    %800 = vmatmul.f32.gmra.mxu0 %v737
    %v801 = vpop.f32.mrf.mxu0
    %v802 = vadd.f32 0.0, %v801
    %803 = vmatmul.f32.gmra.mxu0 %v740
    %v804 = vpop.f32.mrf.mxu0
    %v805 = vadd.f32 0.0, %v804
    %806 = vmatmul.f32.gmra.mxu0 %v743
    %v807 = vpop.f32.mrf.mxu0
    %v808 = vadd.f32 0.0, %v807
    %809 = vmatmul.f32.gmra.mxu0 %v746
    %v810 = vpop.f32.mrf.mxu0
    %v811 = vadd.f32 0.0, %v810
    %812 = vmatmul.f32.gmra.mxu0 %v749
    %v813 = vpop.f32.mrf.mxu0
    %v814 = vadd.f32 0.0, %v813
    %815 = vmatmul.f32.gmra.mxu0 %v752
    %v816 = vpop.f32.mrf.mxu0
    %v817 = vadd.f32 0.0, %v816
    %818 = vmatmul.f32.gmra.mxu0 %v755
    %v819 = vpop.f32.mrf.mxu0
    %v820 = vadd.f32 0.0, %v819
    %821 = vmatmul.f32.gmra.mxu0 %v758
    %v822 = vpop.f32.mrf.mxu0
    %v823 = vadd.f32 0.0, %v822
    %824 = vdwg.mxu0
    %v825 = vld [vmem:[%s4] sm:$0xff]
    %v826 = vld [vmem:[%s4 + $0x8] sm:$0xff]
    %v827 = vld [vmem:[%s5] sm:$0x1]
    %v829 = vperm.slane %v827, 0
    %831 = vmatpush.msra.mxu0 0.0
    %832 = vmatpush.msra.mxu0 0.0
    %833 = vmatpush.msra.mxu0 0.0
    %834 = vmatpush.msra.mxu0 0.0
    %835 = vmatpush.msra.mxu0 0.0
    %836 = vmatpush.msra.mxu0 0.0
    %837 = vmatpush.msra.mxu0 0.0
    %838 = vmatpush.msra.mxu0 0.0
    %839 = vmatpush.msra.mxu0 0.0
    %840 = vmatpush.msra.mxu0 0.0
    %841 = vmatpush.msra.mxu0 0.0
    %842 = vmatpush.msra.mxu0 0.0
    %843 = vmatpush.msra.mxu0 0.0
    %844 = vmatpush.msra.mxu0 0.0
    %845 = vmatpush.msra.mxu0 %v826
    %846 = vmatpush.msra.mxu0 %v825
    %847 = vmatmul.f32.gmra.mxu0 %v713
    %v848 = vpop.f32.mrf.mxu0
    %v849 = vadd.f32 %v829, %v848
    %850 = vmatmul.f32.gmra.mxu0 %v716
    %v851 = vpop.f32.mrf.mxu0
    %v852 = vadd.f32 %v829, %v851
    %853 = vmatmul.f32.gmra.mxu0 %v719
    %v854 = vpop.f32.mrf.mxu0
    %v855 = vadd.f32 %v829, %v854
    %856 = vmatmul.f32.gmra.mxu0 %v722
    %v857 = vpop.f32.mrf.mxu0
    %v858 = vadd.f32 %v829, %v857
    %859 = vmatmul.f32.gmra.mxu0 %v725
    %v860 = vpop.f32.mrf.mxu0
    %v861 = vadd.f32 %v829, %v860
    %862 = vmatmul.f32.gmra.mxu0 %v728
    %v863 = vpop.f32.mrf.mxu0
    %v864 = vadd.f32 %v829, %v863
    %865 = vmatmul.f32.gmra.mxu0 %v731
    %v866 = vpop.f32.mrf.mxu0
    %v867 = vadd.f32 %v829, %v866
    %868 = vmatmul.f32.gmra.mxu0 %v734
    %v869 = vpop.f32.mrf.mxu0
    %v870 = vadd.f32 %v829, %v869
    %871 = vmatmul.f32.gmra.mxu0 %v737
    %v872 = vpop.f32.mrf.mxu0
    %v873 = vadd.f32 %v829, %v872
    %874 = vmatmul.f32.gmra.mxu0 %v740
    %v875 = vpop.f32.mrf.mxu0
    %v876 = vadd.f32 %v829, %v875
    %877 = vmatmul.f32.gmra.mxu0 %v743
    %v878 = vpop.f32.mrf.mxu0
    %v879 = vadd.f32 %v829, %v878
    %880 = vmatmul.f32.gmra.mxu0 %v746
    %v881 = vpop.f32.mrf.mxu0
    %v882 = vadd.f32 %v829, %v881
    %883 = vmatmul.f32.gmra.mxu0 %v749
    %v884 = vpop.f32.mrf.mxu0
    %v885 = vadd.f32 %v829, %v884
    %886 = vmatmul.f32.gmra.mxu0 %v752
    %v887 = vpop.f32.mrf.mxu0
    %v888 = vadd.f32 %v829, %v887
    %889 = vmatmul.f32.gmra.mxu0 %v755
    %v890 = vpop.f32.mrf.mxu0
    %v891 = vadd.f32 %v829, %v890
    %892 = vmatmul.f32.gmra.mxu0 %v758
    %v893 = vpop.f32.mrf.mxu0
    %v894 = vadd.f32 %v829, %v893
    %895 = vdwg.mxu0
    %v896 = vmul.f32 %v28, %v134
    %v897 = vmul.f32 %v29, %v144
    %v898 = vmul.f32 %v30, %v154
    %v899 = vmul.f32 %v31, %v164
    %v900 = vmul.f32 %v32, %v174
    %v901 = vmul.f32 %v33, %v184
    %v902 = vmul.f32 %v34, %v194
    %v903 = vmul.f32 %v35, %v204
    %v904 = vmul.f32 %v36, %v214
    %v905 = vmul.f32 %v37, %v224
    %v906 = vmul.f32 %v38, %v234
    %v907 = vmul.f32 %v39, %v244
    %v908 = vmul.f32 %v40, %v254
    %v909 = vmul.f32 %v41, %v264
    %v910 = vmul.f32 %v42, %v274
    %v911 = vmul.f32 %v43, %v284
    %v912 = vsub.f32 %v896, %v778
    %v913 = vsub.f32 %v897, %v781
    %v914 = vsub.f32 %v898, %v784
    %v915 = vsub.f32 %v899, %v787
    %v916 = vsub.f32 %v900, %v790
    %v917 = vsub.f32 %v901, %v793
    %v918 = vsub.f32 %v902, %v796
    %v919 = vsub.f32 %v903, %v799
    %v920 = vsub.f32 %v904, %v802
    %v921 = vsub.f32 %v905, %v805
    %v922 = vsub.f32 %v906, %v808
    %v923 = vsub.f32 %v907, %v811
    %v924 = vsub.f32 %v908, %v814
    %v925 = vsub.f32 %v909, %v817
    %v926 = vsub.f32 %v910, %v820
    %v927 = vsub.f32 %v911, %v823
    %v928 = vmul.f32 %v912, %v912
    %v929 = vmul.f32 %v913, %v913
    %v930 = vmul.f32 %v914, %v914
    %v931 = vmul.f32 %v915, %v915
    %v932 = vmul.f32 %v916, %v916
    %v933 = vmul.f32 %v917, %v917
    %v934 = vmul.f32 %v918, %v918
    %v935 = vmul.f32 %v919, %v919
    %v936 = vmul.f32 %v920, %v920
    %v937 = vmul.f32 %v921, %v921
    %v938 = vmul.f32 %v922, %v922
    %v939 = vmul.f32 %v923, %v923
    %v940 = vmul.f32 %v924, %v924
    %v941 = vmul.f32 %v925, %v925
    %v942 = vmul.f32 %v926, %v926
    %v943 = vmul.f32 %v927, %v927
    %v944 = vsel %vm60, %v928, 0.0
    %v945 = vsel %vm60, %v929, 0.0
    %v946 = vadd.f32 %v944, %v945
    %v947 = vsel %vm60, %v930, 0.0
    %v948 = vadd.f32 %v946, %v947
    %v949 = vsel %vm60, %v931, 0.0
    %v950 = vadd.f32 %v948, %v949
    %v951 = vsel %vm60, %v932, 0.0
    %v952 = vadd.f32 %v950, %v951
    %v953 = vsel %vm60, %v933, 0.0
    %v954 = vadd.f32 %v952, %v953
    %v955 = vsel %vm60, %v934, 0.0
    %v956 = vadd.f32 %v954, %v955
    %v957 = vsel %vm60, %v935, 0.0
    %v958 = vadd.f32 %v956, %v957
    %v959 = vsel %vm60, %v936, 0.0
    %v960 = vadd.f32 %v958, %v959
    %v961 = vsel %vm60, %v937, 0.0
    %v962 = vadd.f32 %v960, %v961
    %v963 = vsel %vm60, %v938, 0.0
    %v964 = vadd.f32 %v962, %v963
    %v965 = vsel %vm60, %v939, 0.0
    %v966 = vadd.f32 %v964, %v965
    %v967 = vsel %vm60, %v940, 0.0
    %v968 = vadd.f32 %v966, %v967
    %v969 = vsel %vm60, %v941, 0.0
    %v970 = vadd.f32 %v968, %v969
    %v971 = vsel %vm60, %v942, 0.0
    %v972 = vadd.f32 %v970, %v971
    %v973 = vsel %vm60, %v943, 0.0
    %v974 = vadd.f32 %v972, %v973
    %975 = vadd.xlane.f32.xlu0 %v974
    %v976 = vpop.xlane.xlu0 %975
    %v977 = vrot.slane %v976, 4
    %v978 = vadd.f32 %v976, %v977
    %v979 = vrot.slane %v978, 2
    %v980 = vadd.f32 %v978, %v979
    %v981 = vrot.slane %v980, 1
    %v982 = vadd.f32 %v980, %v981
    %s983 = vtos %v982
    %vm984 = vcmask 31744
    %985 = vst.msk [vmem:[%s6] sm:$0xff] %vm984, %v849
    %986 = vst.msk [vmem:[%s6 + $0x8] sm:$0xff] %vm984, %v852
    %987 = vst.msk [vmem:[%s6 + $0x10] sm:$0xff] %vm984, %v855
    %988 = vst.msk [vmem:[%s6 + $0x18] sm:$0xff] %vm984, %v858
    %989 = vst.msk [vmem:[%s6 + $0x20] sm:$0xff] %vm984, %v861
    %990 = vst.msk [vmem:[%s6 + $0x28] sm:$0xff] %vm984, %v864
    %991 = vst.msk [vmem:[%s6 + $0x30] sm:$0xff] %vm984, %v867
    %992 = vst.msk [vmem:[%s6 + $0x38] sm:$0xff] %vm984, %v870
    %993 = vst.msk [vmem:[%s6 + $0x40] sm:$0xff] %vm984, %v873
    %994 = vst.msk [vmem:[%s6 + $0x48] sm:$0xff] %vm984, %v876
    %995 = vst.msk [vmem:[%s6 + $0x50] sm:$0xff] %vm984, %v879
    %996 = vst.msk [vmem:[%s6 + $0x58] sm:$0xff] %vm984, %v882
    %997 = vst.msk [vmem:[%s6 + $0x60] sm:$0xff] %vm984, %v885
    %998 = vst.msk [vmem:[%s6 + $0x68] sm:$0xff] %vm984, %v888
    %999 = vst.msk [vmem:[%s6 + $0x70] sm:$0xff] %vm984, %v891
    %1000 = vst.msk [vmem:[%s6 + $0x78] sm:$0xff] %vm984, %v894
    %1001 = vst.msk [vmem:[%s7] sm:$0xff] %vm482, %v402
    %1002 = vst.msk [vmem:[%s7 + $0x8] sm:$0xff] %vm482, %v403
    %1003 = vst.msk [vmem:[%s7 + $0x10] sm:$0xff] %vm482, %v404
    %1004 = vst.msk [vmem:[%s7 + $0x18] sm:$0xff] %vm482, %v405
    %1005 = vst.msk [vmem:[%s7 + $0x20] sm:$0xff] %vm482, %v406
    %1006 = vst.msk [vmem:[%s7 + $0x28] sm:$0xff] %vm482, %v407
    %1007 = vst.msk [vmem:[%s7 + $0x30] sm:$0xff] %vm482, %v408
    %1008 = vst.msk [vmem:[%s7 + $0x38] sm:$0xff] %vm482, %v409
    %1009 = vst.msk [vmem:[%s7 + $0x40] sm:$0xff] %vm482, %v410
    %1010 = vst.msk [vmem:[%s7 + $0x48] sm:$0xff] %vm482, %v411
    %1011 = vst.msk [vmem:[%s7 + $0x50] sm:$0xff] %vm482, %v412
    %1012 = vst.msk [vmem:[%s7 + $0x58] sm:$0xff] %vm482, %v413
    %1013 = vst.msk [vmem:[%s7 + $0x60] sm:$0xff] %vm482, %v414
    %1014 = vst.msk [vmem:[%s7 + $0x68] sm:$0xff] %vm482, %v415
    %1015 = vst.msk [vmem:[%s7 + $0x70] sm:$0xff] %vm482, %v416
    %1016 = vst.msk [vmem:[%s7 + $0x78] sm:$0xff] %vm482, %v417
    %1017 = vst.msk [vmem:[%s8] sm:$0xff] %vm482, %v563
    %1018 = vst.msk [vmem:[%s8 + $0x8] sm:$0xff] %vm482, %v564
    %1019 = vst.msk [vmem:[%s8 + $0x10] sm:$0xff] %vm482, %v565
    %1020 = vst.msk [vmem:[%s8 + $0x18] sm:$0xff] %vm482, %v566
    %1021 = vst.msk [vmem:[%s8 + $0x20] sm:$0xff] %vm482, %v567
    %1022 = vst.msk [vmem:[%s8 + $0x28] sm:$0xff] %vm482, %v568
    %1023 = vst.msk [vmem:[%s8 + $0x30] sm:$0xff] %vm482, %v569
    %1024 = vst.msk [vmem:[%s8 + $0x38] sm:$0xff] %vm482, %v570
    %1025 = vst.msk [vmem:[%s8 + $0x40] sm:$0xff] %vm482, %v571
    %1026 = vst.msk [vmem:[%s8 + $0x48] sm:$0xff] %vm482, %v572
    %1027 = vst.msk [vmem:[%s8 + $0x50] sm:$0xff] %vm482, %v573
    %1028 = vst.msk [vmem:[%s8 + $0x58] sm:$0xff] %vm482, %v574
    %1029 = vst.msk [vmem:[%s8 + $0x60] sm:$0xff] %vm482, %v575
    %1030 = vst.msk [vmem:[%s8 + $0x68] sm:$0xff] %vm482, %v576
    %1031 = vst.msk [vmem:[%s8 + $0x70] sm:$0xff] %vm482, %v577
    %1032 = vst.msk [vmem:[%s8 + $0x78] sm:$0xff] %vm482, %v578
    %v1033 = vstv %s983
    %1034 = vst [vmem:[#allocation2] sm:$0xff] %v1033
    // Predicated region
    $region26: #{tpu_custom_call.1} parent=1 // pred_check
      _
    $region27: #{tpu_custom_call.1} parent=1 // pred_check_branch
      %1036 = sbr.rel (0) target = $region29
    $region28: #{tpu_custom_call.1} parent=1 // pred_region
      _
    $region29: #{tpu_custom_call.1} parent=1 // pred_fallthru
      _
    // Predicated region
    $region30: #{tpu_custom_call.1} parent=1 // pred_check
      _
    $region31: #{tpu_custom_call.1} parent=1 // pred_check_branch
      %1038 = sbr.rel (0) target = $region33
    $region32: #{tpu_custom_call.1} parent=1 // pred_region
      _
    $region33: #{tpu_custom_call.1} parent=1 // pred_fallthru
      _
    // Predicated region
    $region34: #{tpu_custom_call.1} parent=1 // pred_check
      _
    $region35: #{tpu_custom_call.1} parent=1 // pred_check_branch
      %1040 = sbr.rel (0) target = $region37
    $region36: #{tpu_custom_call.1} parent=1 // pred_region
      _
    $region37: #{tpu_custom_call.1} parent=1 // pred_fallthru
      _
    // Predicated region
    $region38: #{tpu_custom_call.1} parent=1 // pred_check
      _
    $region39: #{tpu_custom_call.1} parent=1 // pred_check_branch
      %1042 = sbr.rel (0) target = $region41
    $region40: #{tpu_custom_call.1} parent=1 // pred_region
      %1044 = vsyncadd [#allocation3], 0
      %s1046 = sshll.u32 [#allocation2], 4
      %s1047 = int_to_ptr.vmem [resolvable:$true] %s1046
      %s1048 = sshll.u32 %s9, 4
      %s1049 = int_to_ptr.hbm [resolvable:$true] %s1048
      %1051 = dma.vmem_to_hbm [thread:$0]  %s1047, 128, %s1049, [#allocation3]
    $region41: #{tpu_custom_call.1} parent=1 // pred_fallthru
      _
    // Predicated region
    $region42: #{tpu_custom_call.1} parent=1 // pred_check
      _
    $region43: #{tpu_custom_call.1} parent=1 // pred_check_branch
      %1053 = sbr.rel (0) target = $region45
    $region44: #{tpu_custom_call.1} parent=1 // pred_region
      _
    $region45: #{tpu_custom_call.1} parent=1 // pred_fallthru
      _
    // Predicated region
    $region46: #{tpu_custom_call.1} parent=1 // pred_check
      _
    $region47: #{tpu_custom_call.1} parent=1 // pred_check_branch
      %1055 = sbr.rel (0) target = $region49
    $region48: #{tpu_custom_call.1} parent=1 // pred_region
      _
    $region49: #{tpu_custom_call.1} parent=1 // pred_fallthru
      _
    // Predicated region
    $region50: #{tpu_custom_call.1} parent=1 // pred_check
      _
    $region51: #{tpu_custom_call.1} parent=1 // pred_check_branch
      %1057 = sbr.rel (0) target = $region53
    $region52: #{tpu_custom_call.1} parent=1 // pred_region
      _
    $region53: #{tpu_custom_call.1} parent=1 // pred_fallthru
      _
    // Predicated region
    $region54: #{tpu_custom_call.1} parent=1 // pred_check
      _
    $region55: #{tpu_custom_call.1} parent=1 // pred_check_branch
      %1059 = sbr.rel (0) target = $region57
    $region56: #{tpu_custom_call.1} parent=1 // pred_region
      %1061 = dma.done [#allocation3], 128
    $region57: #{tpu_custom_call.1} parent=1 // pred_fallthru
      _
    %1062 = vsyncpa [#allocation3], 1

</llo_original>
